<compile_context>
chip_gen: v7x
topology: tpu7x:2x2x1
jax: 0.10.0
libtpu: 0.0.40
codegen_flags: <defaults>
</compile_context>

<pallas_src>
import functools

import jax
import jax.numpy as jnp
from jax.experimental import pallas as pl
from jax.experimental.pallas import tpu as pltpu


def _round_up(x, m):
    return ((x + m - 1) // m) * m


def _const_spec(shape, index_map):
    """BlockSpec for a grid-invariant operand; single-buffered when supported."""
    try:
        return pl.BlockSpec(shape, index_map, pipeline_mode=pl.Buffered(1))
    except TypeError:  # older jax without pipeline_mode on BlockSpec
        return pl.BlockSpec(shape, index_map)


def _vmem_config():
    """Generation-aware (vmem_limit_bytes, heuristic_budget_bytes)."""
    try:
        phys = int(pltpu.get_tpu_info().vmem_capacity_bytes)
    except Exception:
        phys = 64 * 1024 * 1024  # conservative default: assume v7x-like 64 MiB / TC
    if phys >= 128 * 1024 * 1024:          # v5e / v6e: 128 MiB physical VMEM
        return 96 * 1024 * 1024, 80 * 1024 * 1024
    # v7x: 64 MiB per TensorCore -- never reuse the 128-MiB-part budget here
    return 48 * 1024 * 1024, 36 * 1024 * 1024


def mlp_kernel(x_ref, w1_ref, b1_ref, w2_ref, b2_ref, o_ref, acc_ref):
    # Grid = (row blocks [parallel], K blocks over padded feature dim [arbitrary]).
    k = pl.program_id(1)

    @pl.when(k == 0)
    def _():
        acc_ref[...] = jnp.zeros_like(acc_ref)

    # Linear 1 partial product: (block_n, block_k)bf16 @ (block_k, Hp)bf16 -> f32 acc.
    acc_ref[...] += jnp.dot(x_ref[...], w1_ref[...],
                            preferred_element_type=jnp.float32)

    @pl.when(k == pl.num_programs(1) - 1)
    def _():
        h = acc_ref[...] + b1_ref[...]               # f32 bias
        # leaky_relu (PyTorch default negative_slope = 0.01), f32 on the VPU.
        h = jnp.where(h > 0, h, 0.01 * h)
        # TODO(synk): dropout is identity here (inference mode); training-mode dropout
        # would use pltpu.prng_seed / pltpu.stateful_bernoulli.
        # Linear 2: (block_n, Hp) @ (Hp, Cp), bf16 operands, f32 accumulate.
        logits = jnp.dot(h.astype(jnp.bfloat16), w2_ref[...],
                         preferred_element_type=jnp.float32)
        logits = logits + b2_ref[...]                # padded class lanes carry -1e30 bias
        # log_softmax over the (padded, lane-dense) class axis; padded lanes contribute
        # exp(-huge) == 0, so valid lanes are exact.
        m = jnp.max(logits, axis=-1, keepdims=True)
        s = logits - m
        lse = jnp.log(jnp.sum(jnp.exp(s), axis=-1, keepdims=True))
        o_ref[...] = (s - lse).astype(o_ref.dtype)


def prepare_params(params):
    """Pad F/H/C to lane multiples (128) and cast weights to bf16 ONCE, off the hot path."""
    w1, b1, w2, b2 = params
    F, H = w1.shape
    C = w2.shape[1]
    Fp, Hp, Cp = _round_up(F, 128), _round_up(H, 128), _round_up(C, 128)
    w1p = jnp.pad(w1, ((0, Fp - F), (0, Hp - H))).astype(jnp.bfloat16)
    b1p = jnp.pad(b1, ((0, 0), (0, Hp - H))).astype(jnp.float32)
    w2p = jnp.pad(w2, ((0, Hp - H), (0, Cp - C))).astype(jnp.bfloat16)
    # Very negative bias on padded class lanes -> they drop out of the log-sum-exp.
    b2p = jnp.pad(b2, ((0, 0), (0, Cp - C)), constant_values=-1e30).astype(jnp.float32)
    return (w1p, b1p, w2p, b2p)


def nn_forward(x, adj, padded_params, n_class, *, block_n=None, block_k=None,
               out_dtype=jnp.float32):
    # adj is accepted but unused, matching the PyTorch forward signature.
    del adj
    w1p, b1p, w2p, b2p = padded_params
    N, F = x.shape
    Fp, Hp = w1p.shape
    Cp = w2p.shape[1]
    C = int(n_class)
    out_itemsize = jnp.dtype(out_dtype).itemsize

    # Pad to lane multiple and cast to bf16 in one materialized pass (pad already copies).
    xp = jnp.pad(x, ((0, 0), (0, Fp - F))).astype(jnp.bfloat16)

    vmem_limit, vmem_budget = _vmem_config()

    # ---- resident weight footprint (single-buffered: constant index maps) ----------
    fixed = Hp * Cp * 2 + Hp * 4 + Cp * 4     # W2 (bf16) + biases (f32)
    w1_full = Fp * Hp * 2                     # W1 (bf16)

    if block_k is None:
        if fixed + w1_full <= vmem_budget // 2:
            block_k = Fp                      # whole W1 resident, no K reduction
        else:
            # K-tile W1 along the padded feature dim; block_k must divide Fp.
            block_k = min(Fp, 512)
            while block_k > 128 and (Fp % block_k != 0
                                     or fixed + 2 * block_k * Hp * 2 > vmem_budget // 2):
                block_k -= 128
            block_k = max(128, (block_k // 128) * 128)
    single_k = (block_k == Fp)
    w1_res = w1_full if single_k else 2 * block_k * Hp * 2   # W1 VMEM residency
    num_k = pl.cdiv(Fp, block_k)

    # ---- VMEM-aware row tile --------------------------------------------------------
    if block_n is None:
        avail = vmem_budget - fixed - w1_res
        per_row = (2 * block_k * 2            # x bf16, double-buffered
                   + 2 * Cp * out_itemsize    # output, double-buffered
                   + Hp * 4                   # f32 accumulator scratch
                   + Hp * 2                   # bf16 copy of hidden for matmul 2
                   + 2 * Cp * 4)              # f32 logits / log-softmax working set
        if avail <= per_row * 8:
            raise ValueError(
                "NN layer does not fit VMEM even with K-tiling: resident weights "
                f"= {(fixed + w1_res) / 2**20:.1f} MiB, budget = "
                f"{vmem_budget / 2**20:.1f} MiB")
        cap = 1024 if vmem_budget >= 64 * 1024 * 1024 else 512
        cand = (avail // per_row // 8) * 8
        block_n = int(min(_round_up(min(N, cap), 8), cand))
        block_n = max(8, min(block_n, _round_up(N, 8)))
        # Guarantee >=2 row steps so the "parallel" axis can shard across v7x's two
        # TensorCores (no-op on single-TC v5e/v6e, and on tiny N).
        if N >= 16:
            block_n = min(block_n, _round_up(pl.cdiv(N, 2), 8))

    grid = (pl.cdiv(N, block_n), num_k)

    cost = pl.CostEstimate(
        flops=2 * N * (Fp * Hp + Hp * Cp),
        transcendentals=N * (Cp + 1),
        bytes_accessed=(xp.size * 2 + w1p.size * 2 + w2p.size * 2
                        + b1p.size * 4 + b2p.size * 4 + N * Cp * out_itemsize),
    )

    if single_k:
        w1_spec = _const_spec((Fp, Hp), lambda i, k: (0, 0))     # fetched once
    else:
        w1_spec = pl.BlockSpec((block_k, Hp), lambda i, k: (k, 0))

    out_padded = pl.pallas_call(
        mlp_kernel,
        out_shape=jax.ShapeDtypeStruct((N, Cp), out_dtype),
        grid_spec=pltpu.PrefetchScalarGridSpec(
            num_scalar_prefetch=0,
            grid=grid,
            in_specs=[
                pl.BlockSpec((block_n, block_k), lambda i, k: (i, k)),
                w1_spec,
                _const_spec((1, Hp), lambda i, k: (0, 0)),
                _const_spec((Hp, Cp), lambda i, k: (0, 0)),
                _const_spec((1, Cp), lambda i, k: (0, 0)),
            ],
            out_specs=pl.BlockSpec((block_n, Cp), lambda i, k: (i, 0)),
            scratch_shapes=[pltpu.VMEM((block_n, Hp), jnp.float32)],
        ),
        compiler_params=pltpu.CompilerParams(
            dimension_semantics=("parallel", "arbitrary"),
            vmem_limit_bytes=vmem_limit,
        ),
        cost_estimate=cost,
    )(xp, w1p, b1p, w2p, b2p)

    # Slice the lane-padded class dim back to the real number of classes.
    return out_padded[:, :C]


def init_params(key, n_feat, n_class):
    # Mimics nn.Linear's uniform(-1/sqrt(fan_in), 1/sqrt(fan_in)) init, deterministic.
    n_hid = int(2 * n_feat)
    k1, k2, k3, k4 = jax.random.split(key, 4)
    lim1 = 1.0 / jnp.sqrt(n_feat)
    lim2 = 1.0 / jnp.sqrt(n_hid)
    w1 = jax.random.uniform(k1, (n_feat, n_hid), jnp.float32, -lim1, lim1)
    b1 = jax.random.uniform(k2, (1, n_hid), jnp.float32, -lim1, lim1)
    w2 = jax.random.uniform(k3, (n_hid, n_class), jnp.float32, -lim2, lim2)
    b2 = jax.random.uniform(k4, (1, n_class), jnp.float32, -lim2, lim2)
    return w1, b1, w2, b2


def _reference(x, params):
    w1, b1, w2, b2 = params
    h = x @ w1 + b1
    h = jnp.where(h > 0, h, 0.01 * h)
    logits = h @ w2 + b2
    return jax.nn.log_softmax(logits, axis=1)


if __name__ == "__main__":
    key = jax.random.PRNGKey(0)
    kx, ka, kp = jax.random.split(key, 3)

    # ---- small smoke test (shapes implied by the module) -----------------------------
    N, n_feat, n_class = 8, 32, 8
    x = jax.random.normal(kx, (N, n_feat), jnp.float32)
    adj = jax.random.normal(ka, (N, N), jnp.float32)   # unused by forward, as in PyTorch
    params = init_params(kp, n_feat, n_class)
    padded = prepare_params(params)                    # one-time pad + bf16 cast

    fwd = jax.jit(functools.partial(nn_forward, n_class=n_class))
    out = fwd(x, adj, padded)
    jax.block_until_ready(out)

    ref = _reference(x, params)
    assert out.shape == ref.shape
    assert jnp.allclose(out, ref, atol=5e-2, rtol=5e-2), (
        f"max abs diff = {jnp.max(jnp.abs(out - ref))}")

    # ---- exercise the K-reduction + multi-row-block path (still small) ---------------
    N2, F2, C2 = 64, 256, 10
    k2x, k2p = jax.random.split(jax.random.PRNGKey(1))
    x2 = jax.random.normal(k2x, (N2, F2), jnp.float32)
    params2 = init_params(k2p, F2, C2)
    padded2 = prepare_params(params2)
    fwd2 = jax.jit(functools.partial(nn_forward, n_class=C2, block_n=32, block_k=128))
    out2 = fwd2(x2, None, padded2)
    jax.block_until_ready(out2)
    ref2 = _reference(x2, params2)
    assert out2.shape == ref2.shape
    assert jnp.allclose(out2, ref2, atol=7e-2, rtol=5e-2), (
        f"max abs diff = {jnp.max(jnp.abs(out2 - ref2))}")

    print("KERNEL_OK")
</pallas_src>

<mosaic_0001>
module attributes {stable_mosaic.version = 11 : i64} {
  func.func @mlp_kernel(%arg0: i32, %arg1: i32, %arg2: memref<8x128xbf16, #tpu.memory_space<vmem>>, %arg3: memref<128x128xbf16, #tpu.memory_space<vmem>>, %arg4: memref<1x128xf32, #tpu.memory_space<vmem>>, %arg5: memref<128x128xbf16, #tpu.memory_space<vmem>>, %arg6: memref<1x128xf32, #tpu.memory_space<vmem>>, %arg7: memref<8x128xf32, #tpu.memory_space<vmem>>, %arg8: memref<8x128xf32, #tpu.memory_space<vmem>>) attributes {dimension_semantics = [#tpu.dimension_semantics<parallel>, #tpu.dimension_semantics<arbitrary>], iteration_bounds = array<i64: 1, 1>, scalar_prefetch = 0 : i64, scratch_operands = 1 : i64, tpu.core_type = #tpu.core_type<tc>, window_params = [{transform_indices = @transform_0, window_bounds = array<i64: 8, 128>}, {pipeline_mode = #tpu.pipeline_mode<synchronous>, transform_indices = @transform_1, window_bounds = array<i64: 128, 128>}, {pipeline_mode = #tpu.pipeline_mode<synchronous>, transform_indices = @transform_2, window_bounds = array<i64: 1, 128>}, {pipeline_mode = #tpu.pipeline_mode<synchronous>, transform_indices = @transform_3, window_bounds = array<i64: 128, 128>}, {pipeline_mode = #tpu.pipeline_mode<synchronous>, transform_indices = @transform_4, window_bounds = array<i64: 1, 128>}, {transform_indices = @transform_5, window_bounds = array<i64: 8, 128>}]} {
    %c0_i32 = arith.constant 0 : i32
    %0 = arith.cmpi eq, %arg1, %c0_i32 : i32
    %1 = arith.extui %0 : i1 to i32
    %c0_i32_0 = arith.constant 0 : i32
    %2 = arith.cmpi ne, %1, %c0_i32_0 : i32
    scf.if %2 {
      %cst_10 = arith.constant 0.000000e+00 : f32
      %12 = vector.broadcast %cst_10 : f32 to vector<8x128xf32>
      %c0_11 = arith.constant 0 : index
      %c0_12 = arith.constant 0 : index
      %13 = vector.load %arg8[%c0_11, %c0_12] : memref<8x128xf32, #tpu.memory_space<vmem>>, vector<8x128xf32>
      tpu.vector_store %arg8[%c0_11, %c0_12], %12 {strides = array<i32>} : memref<8x128xf32, #tpu.memory_space<vmem>>, vector<8x128xf32>,
    } else {
    }
    %c0 = arith.constant 0 : index
    %c0_1 = arith.constant 0 : index
    %3 = vector.load %arg8[%c0, %c0_1] : memref<8x128xf32, #tpu.memory_space<vmem>>, vector<8x128xf32>
    %c0_2 = arith.constant 0 : index
    %c0_3 = arith.constant 0 : index
    %4 = vector.load %arg2[%c0_2, %c0_3] : memref<8x128xbf16, #tpu.memory_space<vmem>>, vector<8x128xbf16>
    %c0_4 = arith.constant 0 : index
    %c0_5 = arith.constant 0 : index
    %5 = vector.load %arg3[%c0_4, %c0_5] : memref<128x128xbf16, #tpu.memory_space<vmem>>, vector<128x128xbf16>
    %cst = arith.constant dense<0.000000e+00> : vector<8x128xf32>
    %6 = tpu.matmul %4, %5, %cst {dimension_numbers = #tpu.dot_dimension_numbers<[1], [0], [0], [1], [0, 0, 1, 1], [], []>} : vector<8x128xbf16>, vector<128x128xbf16>, vector<8x128xf32> -> vector<8x128xf32>
    %7 = arith.addf %3, %6 : vector<8x128xf32>
    %c0_6 = arith.constant 0 : index
    %c0_7 = arith.constant 0 : index
    %8 = vector.load %arg8[%c0_6, %c0_7] : memref<8x128xf32, #tpu.memory_space<vmem>>, vector<8x128xf32>
    tpu.vector_store %arg8[%c0_6, %c0_7], %7 {strides = array<i32>} : memref<8x128xf32, #tpu.memory_space<vmem>>, vector<8x128xf32>,
    %c0_i32_8 = arith.constant 0 : i32
    %9 = arith.cmpi eq, %arg1, %c0_i32_8 : i32
    %10 = arith.extui %9 : i1 to i32
    %c0_i32_9 = arith.constant 0 : i32
    %11 = arith.cmpi ne, %10, %c0_i32_9 : i32
    scf.if %11 {
      %c0_10 = arith.constant 0 : index
      %c0_11 = arith.constant 0 : index
      %12 = vector.load %arg8[%c0_10, %c0_11] : memref<8x128xf32, #tpu.memory_space<vmem>>, vector<8x128xf32>
      %c0_12 = arith.constant 0 : index
      %c0_13 = arith.constant 0 : index
      %13 = vector.load %arg4[%c0_12, %c0_13] : memref<1x128xf32, #tpu.memory_space<vmem>>, vector<1x128xf32>
      %14 = vector.broadcast %13 : vector<1x128xf32> to vector<8x128xf32>
      %15 = arith.addf %12, %14 : vector<8x128xf32>
      %cst_14 = arith.constant 0.000000e+00 : f32
      %16 = vector.broadcast %cst_14 : f32 to vector<8x128xf32>
      %17 = arith.cmpf ogt, %15, %16 : vector<8x128xf32>
      %cst_15 = arith.constant 0.00999999977 : f32
      %18 = vector.broadcast %cst_15 : f32 to vector<8x128xf32>
      %19 = arith.mulf %18, %15 : vector<8x128xf32>
      %20 = arith.select %17, %15, %19 : vector<8x128xi1>, vector<8x128xf32>
      %21 = arith.truncf %20 : vector<8x128xf32> to vector<8x128xbf16>
      %c0_16 = arith.constant 0 : index
      %c0_17 = arith.constant 0 : index
      %22 = vector.load %arg5[%c0_16, %c0_17] : memref<128x128xbf16, #tpu.memory_space<vmem>>, vector<128x128xbf16>
      %cst_18 = arith.constant dense<0.000000e+00> : vector<8x128xf32>
      %23 = tpu.matmul %21, %22, %cst_18 {dimension_numbers = #tpu.dot_dimension_numbers<[1], [0], [0], [1], [0, 0, 1, 1], [], []>} : vector<8x128xbf16>, vector<128x128xbf16>, vector<8x128xf32> -> vector<8x128xf32>
      %c0_19 = arith.constant 0 : index
      %c0_20 = arith.constant 0 : index
      %24 = vector.load %arg6[%c0_19, %c0_20] : memref<1x128xf32, #tpu.memory_space<vmem>>, vector<1x128xf32>
      %25 = vector.broadcast %24 : vector<1x128xf32> to vector<8x128xf32>
      %26 = arith.addf %23, %25 : vector<8x128xf32>
      %cst_21 = arith.constant dense<0xFF800000> : vector<8xf32>
      %27 = vector.multi_reduction <maximumf>, %26, %cst_21 [1] : vector<8x128xf32> to vector<8xf32>
      %28 = vector.shape_cast %27 : vector<8xf32> to vector<8x1xf32>
      %29 = vector.broadcast %28 : vector<8x1xf32> to vector<8x128xf32>
      %30 = arith.subf %26, %29 : vector<8x128xf32>
      %31 = math.exp %30 : vector<8x128xf32>
      %cst_22 = arith.constant dense<0.000000e+00> : vector<8xf32>
      %32 = vector.multi_reduction <add>, %31, %cst_22 [1] : vector<8x128xf32> to vector<8xf32>
      %33 = vector.shape_cast %32 : vector<8xf32> to vector<8x1xf32>
      %34 = math.log %33 : vector<8x1xf32>
      %35 = vector.broadcast %34 : vector<8x1xf32> to vector<8x128xf32>
      %36 = arith.subf %30, %35 : vector<8x128xf32>
      %c0_23 = arith.constant 0 : index
      %c0_24 = arith.constant 0 : index
      %37 = vector.load %arg7[%c0_23, %c0_24] : memref<8x128xf32, #tpu.memory_space<vmem>>, vector<8x128xf32>
      tpu.vector_store %arg7[%c0_23, %c0_24], %36 {strides = array<i32>} : memref<8x128xf32, #tpu.memory_space<vmem>>, vector<8x128xf32>,
    } else {
    }
    return
  }
  func.func @transform_0(%arg0: i32, %arg1: i32) -> (i32, i32) {
    %c0_i32 = arith.constant 0 : i32
    return %arg0, %arg1 : i32, i32
  }
  func.func @transform_1(%arg0: i32, %arg1: i32) -> (i32, i32) {
    %c0_i32 = arith.constant 0 : i32
    %c0_i32_0 = arith.constant 0 : i32
    %c0_i32_1 = arith.constant 0 : i32
    return %c0_i32, %c0_i32_0 : i32, i32
  }
  func.func @transform_2(%arg0: i32, %arg1: i32) -> (i32, i32) {
    %c0_i32 = arith.constant 0 : i32
    %c0_i32_0 = arith.constant 0 : i32
    %c0_i32_1 = arith.constant 0 : i32
    return %c0_i32, %c0_i32_0 : i32, i32
  }
  func.func @transform_3(%arg0: i32, %arg1: i32) -> (i32, i32) {
    %c0_i32 = arith.constant 0 : i32
    %c0_i32_0 = arith.constant 0 : i32
    %c0_i32_1 = arith.constant 0 : i32
    return %c0_i32, %c0_i32_0 : i32, i32
  }
  func.func @transform_4(%arg0: i32, %arg1: i32) -> (i32, i32) {
    %c0_i32 = arith.constant 0 : i32
    %c0_i32_0 = arith.constant 0 : i32
    %c0_i32_1 = arith.constant 0 : i32
    return %c0_i32, %c0_i32_0 : i32, i32
  }
  func.func @transform_5(%arg0: i32, %arg1: i32) -> (i32, i32) {
    %c0_i32 = arith.constant 0 : i32
    %c0_i32_0 = arith.constant 0 : i32
    return %arg0, %c0_i32 : i32, i32
  }
}

</mosaic_0001>

<llo_original>
// kernel: nn_forward.1
$region0: #{nn_forward.1}
  #allocation0 [shape = 'u32[]', space=smem, size = 0x4, offset = 0x4, fixed_abs, tag = 'smem constant byte address 0x4 - core index']
  #allocation1 [shape = 'u32[144,128]{1,0:T(1,128)}', space=vmem, size = 0x12000, scoped, tag = 'internal scratch']
  #allocation2 [shape = 'f32[8,128]{1,0:T(8,128)}', space=vmem, size = 0x1000, scoped, tag = 'scratch operand']
  %s0 = inlined_call_operand.vmem [shape: bf16[8,128], index: 0, kind: input, shape index: {}]
  %s1 = inlined_call_operand.hbm [shape: bf16[128,128], index: 1, kind: input, shape index: {}]
  %s2 = inlined_call_operand.vmem [shape: f32[1,128], index: 2, kind: input, shape index: {}]
  %s3 = inlined_call_operand.hbm [shape: bf16[128,128], index: 3, kind: input, shape index: {}]
  %s4 = inlined_call_operand.vmem [shape: f32[1,128], index: 4, kind: input, shape index: {}]
  %s5 = inlined_call_operand.hbm [shape: f32[8,128], index: 5, kind: output, shape index: {}]
  %s6 = sld [smem:[#allocation0]]
  $region46: #{nn_forward.1} parent=0
    _
  %s8 = ssub.s32 1, %s6
  %s9 = scalar_select 0, %s8, %s6
  $region1: #{nn_forward.1} parent=0
    #allocation3 [shape = 'u8[32768]{0}', space=vmem, size = 0x8000, scoped, tag = 'input window, operand 1, single buffered']
    #allocation4 [shape = 's32[1]{0}', space=sflag, size = 0x4, scoped, tag = 'scoped memory for nn_forward.1']
    #allocation5 [shape = 's32[1]{0}', space=sflag, size = 0x4, scoped, tag = 'scoped memory for nn_forward.1']
    #allocation6 [shape = 'u8[32768]{0}', space=vmem, size = 0x8000, scoped, tag = 'input window, operand 3, single buffered']
    #allocation7 [shape = 's32[1]{0}', space=sflag, size = 0x4, scoped, tag = 'scoped memory for nn_forward.1']
    #allocation8 [shape = 'u8[4096]{0}', space=vmem, size = 0x1000, scoped, tag = 'output window, operand 0, single buffered']
    %10 = vsyncpa [#allocation4], 0
    %11 = vsyncpa [#allocation7], 0
    %12 = vsyncpa [#allocation5], 0
    // Predicated region
    $region2: #{nn_forward.1} parent=1 // pred_check
      _
    $region3: #{nn_forward.1} parent=1 // pred_check_branch
      %14 = sbr.rel (0) target = $region5
    $region4: #{nn_forward.1} parent=1 // pred_region
      _
    $region5: #{nn_forward.1} parent=1 // pred_fallthru
      _
    // Predicated region
    $region6: #{nn_forward.1} parent=1 // pred_check
      _
    $region7: #{nn_forward.1} parent=1 // pred_check_branch
      %16 = sbr.rel (0) target = $region9
    $region8: #{nn_forward.1} parent=1 // pred_region
      %s18 = ssub.s32 1024, 1024
      %19 = vsyncadd [#allocation4], %s18
      %s20 = sshll.u32 [#allocation3], 4
      %s21 = int_to_ptr.vmem [resolvable:$true] %s20
      %26 = dma.hbm_to_vmem [thread:$0]  %s1, 1024, %s21, [#allocation4], 64, 64, 4
    $region9: #{nn_forward.1} parent=1 // pred_fallthru
      _
    // Predicated region
    $region10: #{nn_forward.1} parent=1 // pred_check
      _
    $region11: #{nn_forward.1} parent=1 // pred_check_branch
      %28 = sbr.rel (0) target = $region13
    $region12: #{nn_forward.1} parent=1 // pred_region
      _
    $region13: #{nn_forward.1} parent=1 // pred_fallthru
      _
    // Predicated region
    $region14: #{nn_forward.1} parent=1 // pred_check
      _
    $region15: #{nn_forward.1} parent=1 // pred_check_branch
      %30 = sbr.rel (0) target = $region17
    $region16: #{nn_forward.1} parent=1 // pred_region
      %s32 = ssub.s32 1024, 1024
      %33 = vsyncadd [#allocation7], %s32
      %s34 = sshll.u32 [#allocation6], 4
      %s35 = int_to_ptr.vmem [resolvable:$true] %s34
      %40 = dma.hbm_to_vmem [thread:$0]  %s3, 1024, %s35, [#allocation7], 64, 64, 4
    $region17: #{nn_forward.1} parent=1 // pred_fallthru
      _
    // Predicated region
    $region18: #{nn_forward.1} parent=1 // pred_check
      _
    $region19: #{nn_forward.1} parent=1 // pred_check_branch
      %42 = sbr.rel (0) target = $region21
    $region20: #{nn_forward.1} parent=1 // pred_region
      _
    $region21: #{nn_forward.1} parent=1 // pred_fallthru
      _
    // Predicated region
    $region22: #{nn_forward.1} parent=1 // pred_check
      _
    $region23: #{nn_forward.1} parent=1 // pred_check_branch
      %44 = sbr.rel (0) target = $region25
    $region24: #{nn_forward.1} parent=1 // pred_region
      %45 = dma.done [#allocation4], 1024
    $region25: #{nn_forward.1} parent=1 // pred_fallthru
      _
    // Predicated region
    $region26: #{nn_forward.1} parent=1 // pred_check
      _
    $region27: #{nn_forward.1} parent=1 // pred_check_branch
      %47 = sbr.rel (0) target = $region29
    $region28: #{nn_forward.1} parent=1 // pred_region
      %48 = dma.done [#allocation7], 1024
    $region29: #{nn_forward.1} parent=1 // pred_fallthru
      _
    %p50 = scmp.eq.s32.totalorder 0, 0
    // Predicated region
    $region30: #{nn_forward.1} parent=1 // pred_check
      %p51 = pneg %p50
    $region31: #{nn_forward.1} parent=1 // pred_check_branch
      %53 = sbr.rel (%p51) target = $region33
    $region32: #{nn_forward.1} parent=1 // pred_region
      %54 = vst [vmem:[#allocation2] sm:$0xff] 0.0
    $region33: #{nn_forward.1} parent=1 // pred_fallthru
      _
    %v55 = vld [vmem:[#allocation2] sm:$0xff]
    %v56 = vld [vmem:[%s0] sm:$0xf]
    %v57 = vld [vmem:[#allocation3] sm:$0xf]
    %v58 = vld [vmem:[#allocation3 + $0x4] sm:$0xf]
    %v59 = vld [vmem:[#allocation3 + $0x8] sm:$0xf]
    %v60 = vld [vmem:[#allocation3 + $0xc] sm:$0xf]
    %v61 = vld [vmem:[#allocation3 + $0x10] sm:$0xf]
    %v62 = vld [vmem:[#allocation3 + $0x14] sm:$0xf]
    %v63 = vld [vmem:[#allocation3 + $0x18] sm:$0xf]
    %v64 = vld [vmem:[#allocation3 + $0x1c] sm:$0xf]
    %v65 = vld [vmem:[#allocation3 + $0x20] sm:$0xf]
    %v66 = vld [vmem:[#allocation3 + $0x24] sm:$0xf]
    %v67 = vld [vmem:[#allocation3 + $0x28] sm:$0xf]
    %v68 = vld [vmem:[#allocation3 + $0x2c] sm:$0xf]
    %v69 = vld [vmem:[#allocation3 + $0x30] sm:$0xf]
    %v70 = vld [vmem:[#allocation3 + $0x34] sm:$0xf]
    %v71 = vld [vmem:[#allocation3 + $0x38] sm:$0xf]
    %v72 = vld [vmem:[#allocation3 + $0x3c] sm:$0xf]
    %v89 = vunpack.c.l.b16 %v57
    %v90 = vunpack.c.l.b16 %v58
    %v91 = vunpack.c.l.b16 %v59
    %v92 = vunpack.c.l.b16 %v60
    %v93 = vunpack.c.l.b16 %v61
    %v94 = vunpack.c.l.b16 %v62
    %v95 = vunpack.c.l.b16 %v63
    %v96 = vunpack.c.l.b16 %v64
    %v97 = vunpack.c.l.b16 %v65
    %v98 = vunpack.c.l.b16 %v66
    %v99 = vunpack.c.l.b16 %v67
    %v100 = vunpack.c.l.b16 %v68
    %v101 = vunpack.c.l.b16 %v69
    %v102 = vunpack.c.l.b16 %v70
    %v103 = vunpack.c.l.b16 %v71
    %v104 = vunpack.c.l.b16 %v72
    %v105 = vpack.c.b16 %v90, %v89
    %v106 = vpack.c.b16 %v92, %v91
    %v107 = vpack.c.b16 %v94, %v93
    %v108 = vpack.c.b16 %v96, %v95
    %v109 = vpack.c.b16 %v98, %v97
    %v110 = vpack.c.b16 %v100, %v99
    %v111 = vpack.c.b16 %v102, %v101
    %v112 = vpack.c.b16 %v104, %v103
    %121 = vmatprep.subr.bf16.mxu0 0
    %122 = vmatpush1.bf16.msra.mxu0 %v105
    %123 = vmatprep.subr.bf16.mxu0 0
    %124 = vmatpush1.bf16.msra.mxu0 %v106
    %125 = vmatprep.subr.bf16.mxu0 0
    %126 = vmatpush1.bf16.msra.mxu0 %v107
    %127 = vmatprep.subr.bf16.mxu0 0
    %128 = vmatpush1.bf16.msra.mxu0 %v108
    %129 = vmatprep.subr.bf16.mxu0 0
    %130 = vmatpush1.bf16.msra.mxu0 %v109
    %131 = vmatprep.subr.bf16.mxu0 0
    %132 = vmatpush1.bf16.msra.mxu0 %v110
    %133 = vmatprep.subr.bf16.mxu0 0
    %134 = vmatpush1.bf16.msra.mxu0 %v111
    %135 = vmatprep.subr.bf16.mxu0 0
    %136 = vmatpush1.bf16.msra.mxu0 %v112
    %137 = vmatprep.subr.bf16.mxu0 0
    %138 = vmatpush1.bf16.msra.mxu0 0
    %139 = vmatprep.subr.bf16.mxu0 0
    %140 = vmatpush1.bf16.msra.mxu0 0
    %141 = vmatprep.subr.bf16.mxu0 0
    %142 = vmatpush1.bf16.msra.mxu0 0
    %143 = vmatprep.subr.bf16.mxu0 0
    %144 = vmatpush1.bf16.msra.mxu0 0
    %145 = vmatprep.subr.bf16.mxu0 0
    %146 = vmatpush1.bf16.msra.mxu0 0
    %147 = vmatprep.subr.bf16.mxu0 0
    %148 = vmatpush1.bf16.msra.mxu0 0
    %149 = vmatprep.subr.bf16.mxu0 0
    %150 = vmatpush1.bf16.msra.mxu0 0
    %151 = vmatprep.subr.bf16.mxu0 0
    %152 = vmatpush1.bf16.msra.mxu0 0
    %153 = vmatprep.mubr.bf16.mxu0 0
    %154 = vmatmul.mubr.bf16.gmra.mrb[0].mxu0 %v56
    %v155 = vpop.f32.mrb[0].mxu0
    %v156 = vadd.f32 0.0, %v155
    %v157 = vpop.f32.mrb[0].mxu0
    %v158 = vpop.f32.mrb[0].mxu0
    %v159 = vpop.f32.mrb[0].mxu0
    %160 = vdwg.mxu0
    %v161 = vadd.f32 %v55, %v156
    %162 = vst [vmem:[#allocation2] sm:$0xff] %v161
    // Predicated region
    $region34: #{nn_forward.1} parent=1 // pred_check
      %p163 = pneg %p50
    $region35: #{nn_forward.1} parent=1 // pred_check_branch
      %165 = sbr.rel (%p163) target = $region37
    $region36: #{nn_forward.1} parent=1 // pred_region
      %v166 = vld [vmem:[#allocation2] sm:$0xff]
      %v167 = vld [vmem:[%s2] sm:$0x1]
      %v169 = vlaneseq
      %v170 = vshrl.u32 %v169, 7
      %v171 = vsub.s32 0, %v170
      %v172 = vrot.slane %v167, %v171
      %v174 = vadd.f32 %v166, %v172
      %vm175 = vcmp.gt.f32.partialorder %v174, 0.0
      %v176 = vmul.f32 %v174, 0.01
      %v177 = vsel %vm175, %v174, %v176
      %v178 = vpack.c.bf16 %v177, %v177
      %v179 = vld [vmem:[#allocation6] sm:$0xf]
      %v180 = vld [vmem:[#allocation6 + $0x4] sm:$0xf]
      %v181 = vld [vmem:[#allocation6 + $0x8] sm:$0xf]
      %v182 = vld [vmem:[#allocation6 + $0xc] sm:$0xf]
      %v183 = vld [vmem:[#allocation6 + $0x10] sm:$0xf]
      %v184 = vld [vmem:[#allocation6 + $0x14] sm:$0xf]
      %v185 = vld [vmem:[#allocation6 + $0x18] sm:$0xf]
      %v186 = vld [vmem:[#allocation6 + $0x1c] sm:$0xf]
      %v187 = vld [vmem:[#allocation6 + $0x20] sm:$0xf]
      %v188 = vld [vmem:[#allocation6 + $0x24] sm:$0xf]
      %v189 = vld [vmem:[#allocation6 + $0x28] sm:$0xf]
      %v190 = vld [vmem:[#allocation6 + $0x2c] sm:$0xf]
      %v191 = vld [vmem:[#allocation6 + $0x30] sm:$0xf]
      %v192 = vld [vmem:[#allocation6 + $0x34] sm:$0xf]
      %v193 = vld [vmem:[#allocation6 + $0x38] sm:$0xf]
      %v194 = vld [vmem:[#allocation6 + $0x3c] sm:$0xf]
      %v195 = vld [vmem:[%s4] sm:$0x1]
      %v197 = vlaneseq
      %v198 = vshrl.u32 %v197, 7
      %v199 = vsub.s32 0, %v198
      %v200 = vrot.slane %v195, %v199
      %v218 = vunpack.c.l.b16 %v179
      %v219 = vunpack.c.l.b16 %v180
      %v220 = vunpack.c.l.b16 %v181
      %v221 = vunpack.c.l.b16 %v182
      %v222 = vunpack.c.l.b16 %v183
      %v223 = vunpack.c.l.b16 %v184
      %v224 = vunpack.c.l.b16 %v185
      %v225 = vunpack.c.l.b16 %v186
      %v226 = vunpack.c.l.b16 %v187
      %v227 = vunpack.c.l.b16 %v188
      %v228 = vunpack.c.l.b16 %v189
      %v229 = vunpack.c.l.b16 %v190
      %v230 = vunpack.c.l.b16 %v191
      %v231 = vunpack.c.l.b16 %v192
      %v232 = vunpack.c.l.b16 %v193
      %v233 = vunpack.c.l.b16 %v194
      %v234 = vpack.c.b16 %v219, %v218
      %v235 = vpack.c.b16 %v221, %v220
      %v236 = vpack.c.b16 %v223, %v222
      %v237 = vpack.c.b16 %v225, %v224
      %v238 = vpack.c.b16 %v227, %v226
      %v239 = vpack.c.b16 %v229, %v228
      %v240 = vpack.c.b16 %v231, %v230
      %v241 = vpack.c.b16 %v233, %v232
      %250 = vmatprep.subr.bf16.mxu0 0
      %251 = vmatpush1.bf16.msra.mxu0 %v234
      %252 = vmatprep.subr.bf16.mxu0 0
      %253 = vmatpush1.bf16.msra.mxu0 %v235
      %254 = vmatprep.subr.bf16.mxu0 0
      %255 = vmatpush1.bf16.msra.mxu0 %v236
      %256 = vmatprep.subr.bf16.mxu0 0
      %257 = vmatpush1.bf16.msra.mxu0 %v237
      %258 = vmatprep.subr.bf16.mxu0 0
      %259 = vmatpush1.bf16.msra.mxu0 %v238
      %260 = vmatprep.subr.bf16.mxu0 0
      %261 = vmatpush1.bf16.msra.mxu0 %v239
      %262 = vmatprep.subr.bf16.mxu0 0
      %263 = vmatpush1.bf16.msra.mxu0 %v240
      %264 = vmatprep.subr.bf16.mxu0 0
      %265 = vmatpush1.bf16.msra.mxu0 %v241
      %266 = vmatprep.subr.bf16.mxu0 0
      %267 = vmatpush1.bf16.msra.mxu0 0
      %268 = vmatprep.subr.bf16.mxu0 0
      %269 = vmatpush1.bf16.msra.mxu0 0
      %270 = vmatprep.subr.bf16.mxu0 0
      %271 = vmatpush1.bf16.msra.mxu0 0
      %272 = vmatprep.subr.bf16.mxu0 0
      %273 = vmatpush1.bf16.msra.mxu0 0
      %274 = vmatprep.subr.bf16.mxu0 0
      %275 = vmatpush1.bf16.msra.mxu0 0
      %276 = vmatprep.subr.bf16.mxu0 0
      %277 = vmatpush1.bf16.msra.mxu0 0
      %278 = vmatprep.subr.bf16.mxu0 0
      %279 = vmatpush1.bf16.msra.mxu0 0
      %280 = vmatprep.subr.bf16.mxu0 0
      %281 = vmatpush1.bf16.msra.mxu0 0
      %282 = vmatprep.mubr.bf16.mxu0 0
      %283 = vmatmul.mubr.bf16.gmra.mrb[0].mxu0 %v178
      %v284 = vpop.f32.mrb[0].mxu0
      %v285 = vadd.f32 %v200, %v284
      %v286 = vpop.f32.mrb[0].mxu0
      %v287 = vpop.f32.mrb[0].mxu0
      %v288 = vpop.f32.mrb[0].mxu0
      %289 = vdwg.mxu0
      %290 = vmax.xlane.f32.xlu0 %v285
      %v291 = vpop.xlane.xlu0 %290
      %v292 = vsub.f32 %v285, %v291
      %v293 = vmul.f32 %v292, 1.442695
      %v294 = vpow.pop %v293
      %295 = vadd.xlane.f32.xlu0 %v294
      %v296 = vpop.xlane.xlu0 %295
      %v297 = vlog2.pop %v296
      %v298 = vmul.f32 %v297, 0.6931472
      %v299 = vsub.f32 %v292, %v298
      %300 = vst [vmem:[#allocation8] sm:$0xff] %v299
    $region37: #{nn_forward.1} parent=1 // pred_fallthru
      _
    // Predicated region
    $region38: #{nn_forward.1} parent=1 // pred_check
      _
    $region39: #{nn_forward.1} parent=1 // pred_check_branch
      %302 = sbr.rel (0) target = $region41
    $region40: #{nn_forward.1} parent=1 // pred_region
      %s304 = ssub.s32 128, 128
      %305 = vsyncadd [#allocation5], %s304
      %s307 = sshll.u32 [#allocation8], 4
      %s308 = int_to_ptr.vmem [resolvable:$true] %s307
      %310 = dma.vmem_to_hbm [thread:$0]  %s308, 128, %s5, [#allocation5]
    $region41: #{nn_forward.1} parent=1 // pred_fallthru
      _
    // Predicated region
    $region42: #{nn_forward.1} parent=1 // pred_check
      _
    $region43: #{nn_forward.1} parent=1 // pred_check_branch
      %312 = sbr.rel (0) target = $region45
    $region44: #{nn_forward.1} parent=1 // pred_region
      %313 = dma.done [#allocation5], 128
    $region45: #{nn_forward.1} parent=1 // pred_fallthru
      _
    %314 = vsyncpa [#allocation4], 1
    %315 = vsyncpa [#allocation7], 1
    %316 = vsyncpa [#allocation5], 1

</llo_original>
